<compile_context>
chip_gen: v7x
topology: tpu7x:2x2x1
jax: 0.10.0
libtpu: 0.0.40
codegen_flags: <defaults>
</compile_context>

<pallas_src>
import math

import jax
import jax.numpy as jnp
from jax.experimental import pallas as pl
from jax.experimental.pallas import tpu as pltpu


def _fuzzify_kernel(xg_ref, p_ref, par_ref, o_ref):
    """One tile of grouped, lane-dense Gaussian fuzzification.

    xg_ref : [TG, G*n_mf]        G batch rows packed per grouped row
    p_ref  : [G*n_mf, G*n_flat]  one-hot broadcast matrix (bf16, exact 0/1)
    par_ref: [2, G*n_flat]       row 0 = centers, row 1 = 1/(sigma*sqrt(2)),
                                 pre-tiled to the (row, term, feature) lane order
    o_ref  : [TG, G*n_flat]      lane-dense output tile
    """
    x = xg_ref[...].astype(jnp.float32)            # [TG, G*n_mf]
    p = p_ref[...]                                 # [G*n_mf, G*n_flat] bf16

    # Broadcast x from (row, feature) lanes to (row, term, feature) lanes with
    # a one-hot matmul on the MXU.  Split x into three bf16 pieces (covers the
    # full f32 mantissa); each bf16 * {0,1} product and its f32 accumulation is
    # exact, so the broadcast is bit-accurate (error <= ~2^-24 relative).
    x0 = x.astype(jnp.bfloat16)
    r1 = x - x0.astype(jnp.float32)
    x1 = r1.astype(jnp.bfloat16)
    x2 = (r1 - x1.astype(jnp.float32)).astype(jnp.bfloat16)
    xb = (jnp.dot(x0, p, preferred_element_type=jnp.float32)
          + jnp.dot(x1, p, preferred_element_type=jnp.float32)
          + jnp.dot(x2, p, preferred_element_type=jnp.float32))   # [TG, G*n_flat]

    par = par_ref[...]                             # [2, G*n_flat]
    c = par[0:1, :]
    inv_s = par[1:2, :]                            # 1/(sigma*sqrt(2))
    z = (xb - c) * inv_s
    o_ref[...] = jnp.exp(-(z * z)).astype(o_ref.dtype)


def _group_size(n_mf, n_terms):
    """Smallest G such that G * n_terms * n_mf is a multiple of 128 lanes."""
    n_flat = n_terms * n_mf
    return 128 // math.gcd(n_flat, 128)


def _choose_group_tile(n_groups, bytes_per_group_row,
                       vmem_budget_bytes=24 * 1024 * 1024):
    """Pick a grouped-row tile size against a double-buffered VMEM budget."""
    tg = vmem_budget_bytes // max(bytes_per_group_row, 1)
    tg = max(8, (tg // 8) * 8)                     # sublane alignment
    if tg >= n_groups and n_groups > 8:
        # Keep >=2 parallel grid steps so both v7x TensorCores get work.
        tg = (((n_groups + 1) // 2) + 7) // 8 * 8
    return min(tg, n_groups)                       # full-dim block always legal


def _vmem_limit_bytes(tg, g, n_mf, n_flat, x_itemsize, out_itemsize):
    buf = 2 * tg * g * (n_mf * x_itemsize + n_flat * out_itemsize)  # dbl-buffered IO
    const = g * n_mf * g * n_flat * 2 + 2 * g * n_flat * 4          # P (bf16) + params
    need = buf + const
    # >=20% headroom; clamp to [32 MiB, 48 MiB] (safe under v7x's 64 MiB physical,
    # and well under v5e/v6e's 128 MiB physical VMEM).
    return int(min(max(int(need * 1.25) + (4 << 20), 32 << 20), 48 << 20))


def fuzzification_forward(x, centers, sigmas, *, block_batch=None,
                          out_dtype=jnp.float32):
    """Fuzzification layer forward pass.

    Args:
      x:       [batch, n_mf] input features (any float dtype; cast in-kernel).
      centers: [n_mf, n_terms] Gaussian centers.
      sigmas:  [n_mf, n_terms] Gaussian widths (zero sigma -> inf, like the ref).
      block_batch: optional batch-row tile size override (in original rows).
      out_dtype: output dtype (f32 matches PyTorch; bf16 halves writeback bytes
                 if the downstream rule layer tolerates it).

    Returns:
      [batch, n_terms, n_mf] membership degrees.
    """
    batch, n_mf = x.shape
    n_terms = centers.shape[1]
    assert centers.shape == (n_mf, n_terms) and sigmas.shape == (n_mf, n_terms)
    n_flat = n_terms * n_mf

    g = _group_size(n_mf, n_terms)                 # g*n_flat % 128 == 0

    # Pad batch to a multiple of the group size (read-side only, tiny cost).
    padded = ((batch + g - 1) // g) * g
    if padded != batch:
        x = jnp.pad(x, ((0, padded - batch), (0, 0)))
    n_groups = padded // g

    # Metadata-only grouped view: g batch rows share one lane-dense row.
    xg = x.reshape(n_groups, g * n_mf)

    # Parameters in output lane order (r, t, k); fold 0.5 and the divide into a
    # single multiplier 1/(sigma*sqrt(2)); pack both into one resident operand.
    c_flat = centers.T.reshape(-1).astype(jnp.float32)                 # c[t*n_mf+k]=center[k,t]
    inv_s_flat = 1.0 / (sigmas.T.reshape(-1).astype(jnp.float32) * math.sqrt(2.0))
    params = jnp.stack([jnp.tile(c_flat, g), jnp.tile(inv_s_flat, g)]) # [2, g*n_flat]

    # One-hot broadcast matrix: output lane j=(r,t,k) reads input lane r*n_mf+k.
    j = jnp.arange(g * n_flat)
    src = (j // n_flat) * n_mf + (j % n_mf)
    p = (jnp.arange(g * n_mf)[:, None] == src[None, :]).astype(jnp.bfloat16)

    x_itemsize = jnp.dtype(x.dtype).itemsize
    out_itemsize = jnp.dtype(out_dtype).itemsize
    if block_batch is None:
        per_row = 2 * g * (n_mf * x_itemsize + n_flat * out_itemsize)
        tg = _choose_group_tile(n_groups, per_row)
    else:
        tg = max(1, int(block_batch) // g)
        if tg < n_groups:
            tg = max(8, (tg // 8) * 8)             # keep sublane-aligned when tiling
        tg = min(tg, n_groups)

    grid = (pl.cdiv(n_groups, tg),)

    out_grouped = pl.pallas_call(
        _fuzzify_kernel,
        out_shape=jax.ShapeDtypeStruct((n_groups, g * n_flat), out_dtype),
        grid_spec=pl.GridSpec(
            grid=grid,
            in_specs=[
                pl.BlockSpec((tg, g * n_mf), lambda i: (i, 0)),            # x tile
                pl.BlockSpec((g * n_mf, g * n_flat), lambda i: (0, 0)),    # one-hot P (resident)
                pl.BlockSpec((2, g * n_flat), lambda i: (0, 0)),           # packed params (resident)
            ],
            out_specs=pl.BlockSpec((tg, g * n_flat), lambda i: (i, 0)),
        ),
        compiler_params=pltpu.CompilerParams(
            dimension_semantics=("parallel",),     # no reduction; shard across TCs on v7x
            vmem_limit_bytes=_vmem_limit_bytes(tg, g, n_mf, n_flat,
                                               x_itemsize, out_itemsize),
        ),
    )(xg, p, params)

    # Row-major [n_groups, g*n_flat] -> [padded, n_flat] is metadata-only.
    out = out_grouped.reshape(padded, n_flat)
    if padded != batch:
        out = out[:batch]
    return out.reshape(batch, n_terms, n_mf)


def fuzzification_reference(x, centers, sigmas):
    """Pure-JAX reference matching the PyTorch module semantics."""
    per_mf = jnp.exp(
        -0.5 * ((x[:, :, None] - centers[None, :, :]) / sigmas[None, :, :]) ** 2
    )                                           # [B, n_mf, n_terms]
    return jnp.transpose(per_mf, (0, 2, 1))     # [B, n_terms, n_mf]


if __name__ == "__main__":
    key = jax.random.PRNGKey(0)

    batch = 200     # not a multiple of the group (16) -> exercises padding + edge block
    n_mf = 8        # n_membership_functions (== number of input features)
    n_terms = 5     # terms per membership function

    kx, _ = jax.random.split(key)
    x = jax.random.normal(kx, (batch, n_mf), dtype=jnp.float32)

    # Deterministic synthetic parameters (not a checkpoint load).
    centers = jnp.tile(
        jnp.linspace(-1.0, 1.0, n_terms, dtype=jnp.float32)[None, :], (n_mf, 1)
    )                                                           # [n_mf, n_terms]
    centers = centers + 0.1 * jnp.arange(n_mf, dtype=jnp.float32)[:, None]
    sigmas = (jnp.full((n_mf, n_terms), 0.75, dtype=jnp.float32)
              + 0.05 * jnp.arange(n_terms, dtype=jnp.float32)[None, :])

    # Small explicit tile so the demo exercises a multi-step grid with a
    # partial edge block (13 grouped rows, tile of 8).
    out = fuzzification_forward(x, centers, sigmas, block_batch=128)
    out = jax.block_until_ready(out)

    ref = fuzzification_reference(x, centers, sigmas)
    assert out.shape == (batch, n_terms, n_mf), out.shape
    assert jnp.allclose(out, ref, atol=1e-5, rtol=1e-5), "mismatch vs reference"

    print("KERNEL_OK")
</pallas_src>

<mosaic_0001>
module attributes {stable_mosaic.version = 11 : i64} {
  func.func @_fuzzify_kernel(%arg0: i32, %arg1: memref<8x128xf32, #tpu.memory_space<vmem>>, %arg2: memref<128x640xbf16, #tpu.memory_space<vmem>>, %arg3: memref<2x640xf32, #tpu.memory_space<vmem>>, %arg4: memref<8x640xf32, #tpu.memory_space<vmem>>) attributes {dimension_semantics = [#tpu.dimension_semantics<parallel>], iteration_bounds = array<i64: 2>, scalar_prefetch = 0 : i64, scratch_operands = 0 : i64, tpu.core_type = #tpu.core_type<tc>, window_params = [{transform_indices = @transform_0, window_bounds = array<i64: 8, 128>}, {pipeline_mode = #tpu.pipeline_mode<synchronous>, transform_indices = @transform_1, window_bounds = array<i64: 128, 640>}, {pipeline_mode = #tpu.pipeline_mode<synchronous>, transform_indices = @transform_2, window_bounds = array<i64: 2, 640>}, {transform_indices = @transform_3, window_bounds = array<i64: 8, 640>}]} {
    %c0 = arith.constant 0 : index
    %c0_0 = arith.constant 0 : index
    %0 = vector.load %arg1[%c0, %c0_0] : memref<8x128xf32, #tpu.memory_space<vmem>>, vector<8x128xf32>
    %c0_1 = arith.constant 0 : index
    %c0_2 = arith.constant 0 : index
    %1 = vector.load %arg2[%c0_1, %c0_2] : memref<128x640xbf16, #tpu.memory_space<vmem>>, vector<128x640xbf16>
    %2 = arith.truncf %0 : vector<8x128xf32> to vector<8x128xbf16>
    %3 = arith.extf %2 : vector<8x128xbf16> to vector<8x128xf32>
    %4 = arith.subf %0, %3 : vector<8x128xf32>
    %5 = arith.truncf %4 : vector<8x128xf32> to vector<8x128xbf16>
    %6 = arith.extf %5 : vector<8x128xbf16> to vector<8x128xf32>
    %7 = arith.subf %4, %6 : vector<8x128xf32>
    %8 = arith.truncf %7 : vector<8x128xf32> to vector<8x128xbf16>
    %cst = arith.constant dense<0.000000e+00> : vector<8x640xf32>
    %9 = tpu.matmul %2, %1, %cst {dimension_numbers = #tpu.dot_dimension_numbers<[1], [0], [0], [1], [0, 0, 1, 1], [], []>} : vector<8x128xbf16>, vector<128x640xbf16>, vector<8x640xf32> -> vector<8x640xf32>
    %cst_3 = arith.constant dense<0.000000e+00> : vector<8x640xf32>
    %10 = tpu.matmul %5, %1, %cst_3 {dimension_numbers = #tpu.dot_dimension_numbers<[1], [0], [0], [1], [0, 0, 1, 1], [], []>} : vector<8x128xbf16>, vector<128x640xbf16>, vector<8x640xf32> -> vector<8x640xf32>
    %11 = arith.addf %9, %10 : vector<8x640xf32>
    %cst_4 = arith.constant dense<0.000000e+00> : vector<8x640xf32>
    %12 = tpu.matmul %8, %1, %cst_4 {dimension_numbers = #tpu.dot_dimension_numbers<[1], [0], [0], [1], [0, 0, 1, 1], [], []>} : vector<8x128xbf16>, vector<128x640xbf16>, vector<8x640xf32> -> vector<8x640xf32>
    %13 = arith.addf %11, %12 : vector<8x640xf32>
    %c0_5 = arith.constant 0 : index
    %c0_6 = arith.constant 0 : index
    %14 = vector.load %arg3[%c0_5, %c0_6] : memref<2x640xf32, #tpu.memory_space<vmem>>, vector<2x640xf32>
    %15 = vector.extract_strided_slice %14 {offsets = [0, 0], sizes = [1, 640], strides = [1, 1]} : vector<2x640xf32> to vector<1x640xf32>
    %16 = vector.extract_strided_slice %14 {offsets = [1, 0], sizes = [1, 640], strides = [1, 1]} : vector<2x640xf32> to vector<1x640xf32>
    %17 = vector.broadcast %15 : vector<1x640xf32> to vector<8x640xf32>
    %18 = arith.subf %13, %17 : vector<8x640xf32>
    %19 = vector.broadcast %16 : vector<1x640xf32> to vector<8x640xf32>
    %20 = arith.mulf %18, %19 : vector<8x640xf32>
    %21 = arith.mulf %20, %20 : vector<8x640xf32>
    %cst_7 = arith.constant 0.000000e+00 : f32
    %22 = vector.broadcast %cst_7 : f32 to vector<8x640xf32>
    %23 = arith.subf %22, %21 : vector<8x640xf32>
    %24 = math.exp %23 : vector<8x640xf32>
    %c0_8 = arith.constant 0 : index
    %c0_9 = arith.constant 0 : index
    %25 = vector.load %arg4[%c0_8, %c0_9] : memref<8x640xf32, #tpu.memory_space<vmem>>, vector<8x640xf32>
    tpu.vector_store %arg4[%c0_8, %c0_9], %24 {strides = array<i32>} : memref<8x640xf32, #tpu.memory_space<vmem>>, vector<8x640xf32>,
    return
  }
  func.func @transform_0(%arg0: i32) -> (i32, i32) {
    %c0_i32 = arith.constant 0 : i32
    %c0_i32_0 = arith.constant 0 : i32
    return %arg0, %c0_i32 : i32, i32
  }
  func.func @transform_1(%arg0: i32) -> (i32, i32) {
    %c0_i32 = arith.constant 0 : i32
    %c0_i32_0 = arith.constant 0 : i32
    %c0_i32_1 = arith.constant 0 : i32
    return %c0_i32, %c0_i32_0 : i32, i32
  }
  func.func @transform_2(%arg0: i32) -> (i32, i32) {
    %c0_i32 = arith.constant 0 : i32
    %c0_i32_0 = arith.constant 0 : i32
    %c0_i32_1 = arith.constant 0 : i32
    return %c0_i32, %c0_i32_0 : i32, i32
  }
  func.func @transform_3(%arg0: i32) -> (i32, i32) {
    %c0_i32 = arith.constant 0 : i32
    %c0_i32_0 = arith.constant 0 : i32
    return %arg0, %c0_i32 : i32, i32
  }
}

</mosaic_0001>

<llo_original>
// kernel: tpu_custom_call.1
$region0: #{tpu_custom_call.1}
  #allocation0 [shape = 'u32[]', space=smem, size = 0x4, offset = 0x4, fixed_abs, tag = 'smem constant byte address 0x4 - core index']
  #allocation1 [shape = 'u32[144,128]{1,0:T(1,128)}', space=vmem, size = 0x12000, scoped, tag = 'internal scratch']
  %s0 = inlined_call_operand.hbm [shape: f32[13,128], index: 0, kind: input, shape index: {}]
  %s1 = inlined_call_operand.hbm [shape: bf16[128,640], index: 1, kind: input, shape index: {}]
  %s2 = inlined_call_operand.hbm [shape: f32[2,640], index: 2, kind: input, shape index: {}]
  %s3 = inlined_call_operand.hbm [shape: f32[13,640], index: 3, kind: output, shape index: {}]
  %s4 = sld [smem:[#allocation0]]
  $region57: #{tpu_custom_call.1} parent=0
    _
  %s6 = ssub.s32 1, %s4
  %s7 = scalar_select 0, %s6, %s4
  $region1: #{tpu_custom_call.1} parent=0
    #allocation2 [shape = 'u8[8192]{0}', space=vmem, size = 0x2000, scoped, tag = 'input window, operand 0']
    #allocation3 [shape = 's32[2]{0}', space=sflag, size = 0x8, scoped, tag = 'scoped memory for tpu_custom_call.1']
    #allocation4 [shape = 's32[2]{0}', space=sflag, size = 0x8, scoped, tag = 'scoped memory for tpu_custom_call.1']
    #allocation5 [shape = 'u8[163840]{0}', space=vmem, size = 0x28000, scoped, tag = 'input window, operand 1, single buffered']
    #allocation6 [shape = 's32[1]{0}', space=sflag, size = 0x4, scoped, tag = 'scoped memory for tpu_custom_call.1']
    #allocation7 [shape = 'u8[5120]{0}', space=vmem, size = 0x1400, scoped, tag = 'input window, operand 2, single buffered']
    #allocation8 [shape = 'u8[40960]{0}', space=vmem, size = 0xa000, scoped, tag = 'output window, operand 0']
    %8 = vsyncpa [#allocation3], 0
    %s9 = scalar_lea.sflag [#allocation3], 1
    %10 = vsyncpa %s9, 0
    %11 = vsyncpa [#allocation6], 0
    %12 = vsyncpa [#allocation4], 0
    %s13 = scalar_lea.sflag [#allocation4], 1
    %14 = vsyncpa %s13, 0
    loop: start=0, step=1, limit=4
    $region2: #{tpu_custom_call.1} parent=1 // loop_pre_header
      _
    $region3: #{tpu_custom_call.1} parent=1 // loop_header
      %s16 = sphi 0, %s20
      %p17 = scmp.ge.s32.totalorder %s16, 4
      %s26 = sphi 0, %s28
      %s29 = sphi 0, %s26
      %s30 = sphi 0, %s29
      %s46 = sphi 0, %s30
      %s50 = sphi 0, %s50
      %s52 = sphi 0, %s50
      %s53 = sphi 0, %s52
      %s67 = sphi 0, %s53
      %s71 = sphi 0, %s71
      %s73 = sphi 0, %s71
      %s74 = sphi 0, %s73
      %s88 = sphi 0, %s74
      %s94 = sphi 0, %s96
      %s97 = sphi 0, %s94
      %s98 = sphi 0, %s97
      %s114 = sphi 0, %s98
    $region4: #{tpu_custom_call.1} parent=1 // loop_header_branch
      %19 = sbr.rel (%p17) target = $region8
    $region5: #{tpu_custom_call.1} parent=1 // loop_body
      %s21 = ssub.s32 %s16, 1
      %s22 = ssub.s32 %s16, 2
      %s23 = sadd.s32 %s16, 1
      %s24 = ssub.s32 %s16, %s23
      %p25 = scmp.eq.s32.totalorder %s24, 0
      %s27 = sadd.s32 %s26, 1
      %s28 = scalar_select %p25, %s26, %s27
      %p31 = pneg %p25
      %p32 = scmp.eq.s32.totalorder %s16, 1
      %p33 = por %p31, %p32
      %p34 = scmp.ne.s32.totalorder %s26, %s29
      %p35 = scmp.eq.s32.totalorder %s16, 0
      %p36 = por %p34, %p35
      %p37 = scmp.ne.s32.totalorder %s26, %s29
      %p38 = scmp.eq.s32.totalorder %s21, 1
      %p39 = por %p37, %p38
      %p40 = scmp.ne.s32.totalorder %s29, %s30
      %p41 = scmp.eq.s32.totalorder %s21, 0
      %p42 = por %p40, %p41
      %p43 = scmp.ne.s32.totalorder %s29, %s30
      %p44 = scmp.eq.s32.totalorder %s22, 1
      %p45 = por %p43, %p44
      %p47 = scmp.ne.s32.totalorder %s30, %s46
      %p48 = scmp.eq.s32.totalorder %s22, 0
      %p49 = por %p47, %p48
      %s51 = sadd.s32 %s50, 1
      %p54 = scmp.eq.s32.totalorder %s16, 1
      %p55 = scmp.ne.s32.totalorder %s50, %s52
      %p56 = scmp.eq.s32.totalorder %s16, 0
      %p57 = por %p55, %p56
      %p58 = scmp.ne.s32.totalorder %s50, %s52
      %p59 = scmp.eq.s32.totalorder %s21, 1
      %p60 = por %p58, %p59
      %p61 = scmp.ne.s32.totalorder %s52, %s53
      %p62 = scmp.eq.s32.totalorder %s21, 0
      %p63 = por %p61, %p62
      %p64 = scmp.ne.s32.totalorder %s52, %s53
      %p65 = scmp.eq.s32.totalorder %s22, 1
      %p66 = por %p64, %p65
      %p68 = scmp.ne.s32.totalorder %s53, %s67
      %p69 = scmp.eq.s32.totalorder %s22, 0
      %p70 = por %p68, %p69
      %s72 = sadd.s32 %s71, 1
      %p75 = scmp.eq.s32.totalorder %s16, 1
      %p76 = scmp.ne.s32.totalorder %s71, %s73
      %p77 = scmp.eq.s32.totalorder %s16, 0
      %p78 = por %p76, %p77
      %p79 = scmp.ne.s32.totalorder %s71, %s73
      %p80 = scmp.eq.s32.totalorder %s21, 1
      %p81 = por %p79, %p80
      %p82 = scmp.ne.s32.totalorder %s73, %s74
      %p83 = scmp.eq.s32.totalorder %s21, 0
      %p84 = por %p82, %p83
      %p85 = scmp.ne.s32.totalorder %s73, %s74
      %p86 = scmp.eq.s32.totalorder %s22, 1
      %p87 = por %p85, %p86
      %p89 = scmp.ne.s32.totalorder %s74, %s88
      %p90 = scmp.eq.s32.totalorder %s22, 0
      %p91 = por %p89, %p90
      %s92 = ssub.s32 %s16, %s23
      %p93 = scmp.eq.s32.totalorder %s92, 0
      %s95 = sadd.s32 %s94, 1
      %s96 = scalar_select %p93, %s94, %s95
      %p99 = pneg %p93
      %p100 = scmp.eq.s32.totalorder %s16, 1
      %p101 = por %p99, %p100
      %p102 = scmp.ne.s32.totalorder %s94, %s97
      %p103 = scmp.eq.s32.totalorder %s16, 0
      %p104 = por %p102, %p103
      %p105 = scmp.ne.s32.totalorder %s94, %s97
      %p106 = scmp.eq.s32.totalorder %s21, 1
      %p107 = por %p105, %p106
      %p108 = scmp.ne.s32.totalorder %s97, %s98
      %p109 = scmp.eq.s32.totalorder %s21, 0
      %p110 = por %p108, %p109
      %p111 = scmp.ne.s32.totalorder %s97, %s98
      %p112 = scmp.eq.s32.totalorder %s22, 1
      %p113 = por %p111, %p112
      %p115 = scmp.ne.s32.totalorder %s98, %s114
      %p116 = scmp.eq.s32.totalorder %s22, 0
      %p117 = por %p115, %p116
      %p118 = scmp.le.s32.totalorder 1, %s16
      %p119 = scmp.lt.s32.totalorder %s16, 3
      %p120 = pnand %p118, %p119
      %p121 = pneg %p120
      // Predicated region
      $region9: #{tpu_custom_call.1} parent=5 // pred_check
        _
      $region10: #{tpu_custom_call.1} parent=5 // pred_check_branch
        %123 = sbr.rel (%p120) target = $region12
      $region11: #{tpu_custom_call.1} parent=5 // pred_region
        %s124 = ssub.s32 %s16, 1
        // Predicated region
        $region13: #{tpu_custom_call.1} parent=11 // pred_check
          %p125 = pneg %p63
        $region14: #{tpu_custom_call.1} parent=11 // pred_check_branch
          %127 = sbr.rel (%p125) target = $region16
        $region15: #{tpu_custom_call.1} parent=11 // pred_region
          %s129 = ssub.s32 5120, 5120
          %130 = vsyncadd [#allocation6], %s129
          %s131 = sshll.u32 [#allocation5], 4
          %s132 = int_to_ptr.vmem [resolvable:$true] %s131
          %137 = dma.hbm_to_vmem [thread:$0]  %s1, 5120, %s132, [#allocation6], 320, 320, 20
        $region16: #{tpu_custom_call.1} parent=11 // pred_fallthru
          _
        // Predicated region
        $region17: #{tpu_custom_call.1} parent=11 // pred_check
          %p138 = pneg %p84
        $region18: #{tpu_custom_call.1} parent=11 // pred_check_branch
          %140 = sbr.rel (%p138) target = $region20
        $region19: #{tpu_custom_call.1} parent=11 // pred_region
          %s142 = ssub.s32 160, 160
          %143 = vsyncadd [#allocation6], %s142
          %s145 = sshll.u32 [#allocation7], 4
          %s146 = int_to_ptr.vmem [resolvable:$true] %s145
          %148 = dma.hbm_to_vmem [thread:$0]  %s2, 160, %s146, [#allocation6]
        $region20: #{tpu_custom_call.1} parent=11 // pred_fallthru
          _
      $region12: #{tpu_custom_call.1} parent=5 // pred_fallthru
        _
      %p149 = scmp.lt.s32.totalorder %s16, 2
      // Predicated region
      $region21: #{tpu_custom_call.1} parent=5 // pred_check
        %p150 = pneg %p149
      $region22: #{tpu_custom_call.1} parent=5 // pred_check_branch
        %152 = sbr.rel (%p150) target = $region24
      $region23: #{tpu_custom_call.1} parent=5 // pred_region
        // Predicated region
        $region25: #{tpu_custom_call.1} parent=23 // pred_check
          %p153 = pneg %p36
        $region26: #{tpu_custom_call.1} parent=23 // pred_check_branch
          %155 = sbr.rel (%p153) target = $region28
        $region27: #{tpu_custom_call.1} parent=23 // pred_region
          %s156 = sand.u32 %s26, 1
          %s157 = scalar_lea.sflag [#allocation3], %s156
          %s158 = sand.u32 %s26, 1
          %s159 = smul.addr %s158, 8
          %s160 = scalar_lea.vmem [#allocation2], %s159
          %s162 = ssub.s32 128, 128
          %163 = vsyncadd %s157, %s162
          %s164 = smul.addr %s16, 128
          %s165 = scalar_lea.hbm %s0, %s164
          %s167 = sshll.u32 %s160, 4
          %s168 = int_to_ptr.vmem [resolvable:$true] %s167
          %170 = dma.hbm_to_vmem [thread:$0]  %s165, 128, %s168, %s157
        $region28: #{tpu_custom_call.1} parent=23 // pred_fallthru
          _
      $region24: #{tpu_custom_call.1} parent=5 // pred_fallthru
        _
      %p171 = scmp.le.s32.totalorder 1, %s16
      %p172 = scmp.lt.s32.totalorder %s16, 3
      %p173 = pnand %p171, %p172
      %p174 = pneg %p173
      // Predicated region
      $region29: #{tpu_custom_call.1} parent=5 // pred_check
        _
      $region30: #{tpu_custom_call.1} parent=5 // pred_check_branch
        %176 = sbr.rel (%p173) target = $region32
      $region31: #{tpu_custom_call.1} parent=5 // pred_region
        %s177 = ssub.s32 %s16, 1
        %s178 = sand.u32 %s29, 1
        %s179 = scalar_lea.sflag [#allocation3], %s178
        %s180 = sand.u32 %s29, 1
        %s181 = smul.addr %s180, 8
        %s182 = scalar_lea.vmem [#allocation2], %s181
        // Predicated region
        $region33: #{tpu_custom_call.1} parent=31 // pred_check
          %p183 = pneg %p42
        $region34: #{tpu_custom_call.1} parent=31 // pred_check_branch
          %185 = sbr.rel (%p183) target = $region36
        $region35: #{tpu_custom_call.1} parent=31 // pred_region
          %186 = dma.done %s179, 128
        $region36: #{tpu_custom_call.1} parent=31 // pred_fallthru
          _
        // Predicated region
        $region37: #{tpu_custom_call.1} parent=31 // pred_check
          %p187 = pneg %p63
        $region38: #{tpu_custom_call.1} parent=31 // pred_check_branch
          %189 = sbr.rel (%p187) target = $region40
        $region39: #{tpu_custom_call.1} parent=31 // pred_region
          %190 = dma.done [#allocation6], 5120
        $region40: #{tpu_custom_call.1} parent=31 // pred_fallthru
          _
        // Predicated region
        $region41: #{tpu_custom_call.1} parent=31 // pred_check
          %p191 = pneg %p84
        $region42: #{tpu_custom_call.1} parent=31 // pred_check_branch
          %193 = sbr.rel (%p191) target = $region44
        $region43: #{tpu_custom_call.1} parent=31 // pred_region
          %194 = dma.done [#allocation6], 160
        $region44: #{tpu_custom_call.1} parent=31 // pred_fallthru
          _
        %s195 = sand.u32 %s29, 1
        %s196 = scalar_lea.sflag [#allocation3], %s195
        %s197 = sand.u32 %s29, 1
        %s198 = smul.addr %s197, 8
        %s199 = scalar_lea.vmem [#allocation2], %s198
        %p200 = pneg %p42
        %p201 = pneg %p39
        %p202 = pneg %p63
        %p203 = pneg %p60
        %p204 = pneg %p84
        %p205 = pneg %p81
        %p206 = pneg %p110
        %p207 = pneg %p107
        %s208 = sand.u32 %s97, 1
        %s209 = scalar_lea.sflag [#allocation4], %s208
        %s210 = sand.u32 %s97, 1
        %s211 = smul.addr %s210, 40
        %s212 = scalar_lea.vmem [#allocation8], %s211
        %v214 = vld [vmem:[%s182] sm:$0xff]
        %v215 = vld [vmem:[#allocation5] sm:$0xff]
        %v216 = vld [vmem:[#allocation5 + $0x8] sm:$0xff]
        %v217 = vld [vmem:[#allocation5 + $0x10] sm:$0xf]
        %v218 = vld [vmem:[#allocation5 + $0x14] sm:$0xff]
        %v219 = vld [vmem:[#allocation5 + $0x1c] sm:$0xff]
        %v220 = vld [vmem:[#allocation5 + $0x24] sm:$0xf]
        %v221 = vld [vmem:[#allocation5 + $0x28] sm:$0xff]
        %v222 = vld [vmem:[#allocation5 + $0x30] sm:$0xff]
        %v223 = vld [vmem:[#allocation5 + $0x38] sm:$0xf]
        %v224 = vld [vmem:[#allocation5 + $0x3c] sm:$0xff]
        %v225 = vld [vmem:[#allocation5 + $0x44] sm:$0xff]
        %v226 = vld [vmem:[#allocation5 + $0x4c] sm:$0xf]
        %v227 = vld [vmem:[#allocation5 + $0x50] sm:$0xff]
        %v228 = vld [vmem:[#allocation5 + $0x58] sm:$0xff]
        %v229 = vld [vmem:[#allocation5 + $0x60] sm:$0xf]
        %v230 = vld [vmem:[#allocation5 + $0x64] sm:$0xff]
        %v231 = vld [vmem:[#allocation5 + $0x6c] sm:$0xff]
        %v232 = vld [vmem:[#allocation5 + $0x74] sm:$0xf]
        %v233 = vld [vmem:[#allocation5 + $0x78] sm:$0xff]
        %v234 = vld [vmem:[#allocation5 + $0x80] sm:$0xff]
        %v235 = vld [vmem:[#allocation5 + $0x88] sm:$0xf]
        %v236 = vld [vmem:[#allocation5 + $0x8c] sm:$0xff]
        %v237 = vld [vmem:[#allocation5 + $0x94] sm:$0xff]
        %v238 = vld [vmem:[#allocation5 + $0x9c] sm:$0xf]
        %v239 = vld [vmem:[#allocation5 + $0xa0] sm:$0xff]
        %v240 = vld [vmem:[#allocation5 + $0xa8] sm:$0xff]
        %v241 = vld [vmem:[#allocation5 + $0xb0] sm:$0xf]
        %v242 = vld [vmem:[#allocation5 + $0xb4] sm:$0xff]
        %v243 = vld [vmem:[#allocation5 + $0xbc] sm:$0xff]
        %v244 = vld [vmem:[#allocation5 + $0xc4] sm:$0xf]
        %v245 = vld [vmem:[#allocation5 + $0xc8] sm:$0xff]
        %v246 = vld [vmem:[#allocation5 + $0xd0] sm:$0xff]
        %v247 = vld [vmem:[#allocation5 + $0xd8] sm:$0xf]
        %v248 = vld [vmem:[#allocation5 + $0xdc] sm:$0xff]
        %v249 = vld [vmem:[#allocation5 + $0xe4] sm:$0xff]
        %v250 = vld [vmem:[#allocation5 + $0xec] sm:$0xf]
        %v251 = vld [vmem:[#allocation5 + $0xf0] sm:$0xff]
        %v252 = vld [vmem:[#allocation5 + $0xf8] sm:$0xff]
        %v253 = vld [vmem:[#allocation5 + $0x100] sm:$0xf]
        %v254 = vld [vmem:[#allocation5 + $0x104] sm:$0xff]
        %v255 = vld [vmem:[#allocation5 + $0x10c] sm:$0xff]
        %v256 = vld [vmem:[#allocation5 + $0x114] sm:$0xf]
        %v257 = vld [vmem:[#allocation5 + $0x118] sm:$0xff]
        %v258 = vld [vmem:[#allocation5 + $0x120] sm:$0xff]
        %v259 = vld [vmem:[#allocation5 + $0x128] sm:$0xf]
        %v260 = vld [vmem:[#allocation5 + $0x12c] sm:$0xff]
        %v261 = vld [vmem:[#allocation5 + $0x134] sm:$0xff]
        %v262 = vld [vmem:[#allocation5 + $0x13c] sm:$0xf]
        %v263 = vpack.c.bf16 %v214, %v214
        %v264 = vunpack.c.l.bf16 %v263
        %v265 = vsub.f32 %v214, %v264
        %v266 = vpack.c.bf16 %v265, %v265
        %v267 = vunpack.c.l.bf16 %v266
        %v268 = vsub.f32 %v265, %v267
        %v269 = vpack.c.bf16 %v268, %v268
        %v318 = vunpack.c.l.b16 %v215
        %v319 = vunpack.c.h.b16 %v215
        %v320 = vunpack.c.l.b16 %v216
        %v321 = vunpack.c.h.b16 %v216
        %v322 = vunpack.c.l.b16 %v217
        %v323 = vunpack.c.l.b16 %v218
        %v324 = vunpack.c.h.b16 %v218
        %v325 = vunpack.c.l.b16 %v219
        %v326 = vunpack.c.h.b16 %v219
        %v327 = vunpack.c.l.b16 %v220
        %v328 = vunpack.c.l.b16 %v221
        %v329 = vunpack.c.h.b16 %v221
        %v330 = vunpack.c.l.b16 %v222
        %v331 = vunpack.c.h.b16 %v222
        %v332 = vunpack.c.l.b16 %v223
        %v333 = vunpack.c.l.b16 %v224
        %v334 = vunpack.c.h.b16 %v224
        %v335 = vunpack.c.l.b16 %v225
        %v336 = vunpack.c.h.b16 %v225
        %v337 = vunpack.c.l.b16 %v226
        %v338 = vunpack.c.l.b16 %v227
        %v339 = vunpack.c.h.b16 %v227
        %v340 = vunpack.c.l.b16 %v228
        %v341 = vunpack.c.h.b16 %v228
        %v342 = vunpack.c.l.b16 %v229
        %v343 = vunpack.c.l.b16 %v230
        %v344 = vunpack.c.h.b16 %v230
        %v345 = vunpack.c.l.b16 %v231
        %v346 = vunpack.c.h.b16 %v231
        %v347 = vunpack.c.l.b16 %v232
        %v348 = vunpack.c.l.b16 %v233
        %v349 = vunpack.c.h.b16 %v233
        %v350 = vunpack.c.l.b16 %v234
        %v351 = vunpack.c.h.b16 %v234
        %v352 = vunpack.c.l.b16 %v235
        %v353 = vunpack.c.l.b16 %v236
        %v354 = vunpack.c.h.b16 %v236
        %v355 = vunpack.c.l.b16 %v237
        %v356 = vunpack.c.h.b16 %v237
        %v357 = vunpack.c.l.b16 %v238
        %v358 = vunpack.c.l.b16 %v239
        %v359 = vunpack.c.h.b16 %v239
        %v360 = vunpack.c.l.b16 %v240
        %v361 = vunpack.c.h.b16 %v240
        %v362 = vunpack.c.l.b16 %v241
        %v363 = vunpack.c.l.b16 %v242
        %v364 = vunpack.c.h.b16 %v242
        %v365 = vunpack.c.l.b16 %v243
        %v366 = vunpack.c.h.b16 %v243
        %v367 = vunpack.c.l.b16 %v244
        %v368 = vunpack.c.l.b16 %v245
        %v369 = vunpack.c.h.b16 %v245
        %v370 = vunpack.c.l.b16 %v246
        %v371 = vunpack.c.h.b16 %v246
        %v372 = vunpack.c.l.b16 %v247
        %v373 = vunpack.c.l.b16 %v248
        %v374 = vunpack.c.h.b16 %v248
        %v375 = vunpack.c.l.b16 %v249
        %v376 = vunpack.c.h.b16 %v249
        %v377 = vunpack.c.l.b16 %v250
        %v378 = vunpack.c.l.b16 %v251
        %v379 = vunpack.c.h.b16 %v251
        %v380 = vunpack.c.l.b16 %v252
        %v381 = vunpack.c.h.b16 %v252
        %v382 = vunpack.c.l.b16 %v253
        %v383 = vunpack.c.l.b16 %v254
        %v384 = vunpack.c.h.b16 %v254
        %v385 = vunpack.c.l.b16 %v255
        %v386 = vunpack.c.h.b16 %v255
        %v387 = vunpack.c.l.b16 %v256
        %v388 = vunpack.c.l.b16 %v257
        %v389 = vunpack.c.h.b16 %v257
        %v390 = vunpack.c.l.b16 %v258
        %v391 = vunpack.c.h.b16 %v258
        %v392 = vunpack.c.l.b16 %v259
        %v393 = vunpack.c.l.b16 %v260
        %v394 = vunpack.c.h.b16 %v260
        %v395 = vunpack.c.l.b16 %v261
        %v396 = vunpack.c.h.b16 %v261
        %v397 = vunpack.c.l.b16 %v262
        %v398 = vpack.c.b16 %v323, %v318
        %v399 = vpack.c.b16 %v324, %v319
        %v400 = vpack.c.b16 %v325, %v320
        %v401 = vpack.c.b16 %v326, %v321
        %v402 = vpack.c.b16 %v327, %v322
        %v403 = vpack.c.b16 %v333, %v328
        %v404 = vpack.c.b16 %v334, %v329
        %v405 = vpack.c.b16 %v335, %v330
        %v406 = vpack.c.b16 %v336, %v331
        %v407 = vpack.c.b16 %v337, %v332
        %v408 = vpack.c.b16 %v343, %v338
        %v409 = vpack.c.b16 %v344, %v339
        %v410 = vpack.c.b16 %v345, %v340
        %v411 = vpack.c.b16 %v346, %v341
        %v412 = vpack.c.b16 %v347, %v342
        %v413 = vpack.c.b16 %v353, %v348
        %v414 = vpack.c.b16 %v354, %v349
        %v415 = vpack.c.b16 %v355, %v350
        %v416 = vpack.c.b16 %v356, %v351
        %v417 = vpack.c.b16 %v357, %v352
        %v418 = vpack.c.b16 %v363, %v358
        %v419 = vpack.c.b16 %v364, %v359
        %v420 = vpack.c.b16 %v365, %v360
        %v421 = vpack.c.b16 %v366, %v361
        %v422 = vpack.c.b16 %v367, %v362
        %v423 = vpack.c.b16 %v373, %v368
        %v424 = vpack.c.b16 %v374, %v369
        %v425 = vpack.c.b16 %v375, %v370
        %v426 = vpack.c.b16 %v376, %v371
        %v427 = vpack.c.b16 %v377, %v372
        %v428 = vpack.c.b16 %v383, %v378
        %v429 = vpack.c.b16 %v384, %v379
        %v430 = vpack.c.b16 %v385, %v380
        %v431 = vpack.c.b16 %v386, %v381
        %v432 = vpack.c.b16 %v387, %v382
        %v433 = vpack.c.b16 %v393, %v388
        %v434 = vpack.c.b16 %v394, %v389
        %v435 = vpack.c.b16 %v395, %v390
        %v436 = vpack.c.b16 %v396, %v391
        %v437 = vpack.c.b16 %v397, %v392
        %478 = vmatprep.subr.bf16.mxu0 %v399
        %479 = vmatpush1.bf16.msra.mxu0 %v398
        %480 = vmatprep.subr.bf16.mxu0 %v404
        %481 = vmatpush1.bf16.msra.mxu0 %v403
        %482 = vmatprep.subr.bf16.mxu0 %v409
        %483 = vmatpush1.bf16.msra.mxu0 %v408
        %484 = vmatprep.subr.bf16.mxu0 %v414
        %485 = vmatpush1.bf16.msra.mxu0 %v413
        %486 = vmatprep.subr.bf16.mxu0 %v419
        %487 = vmatpush1.bf16.msra.mxu0 %v418
        %488 = vmatprep.subr.bf16.mxu0 %v424
        %489 = vmatpush1.bf16.msra.mxu0 %v423
        %490 = vmatprep.subr.bf16.mxu0 %v429
        %491 = vmatpush1.bf16.msra.mxu0 %v428
        %492 = vmatprep.subr.bf16.mxu0 %v434
        %493 = vmatpush1.bf16.msra.mxu0 %v433
        %494 = vmatprep.subr.bf16.mxu0 0
        %495 = vmatpush1.bf16.msra.mxu0 0
        %496 = vmatprep.subr.bf16.mxu0 0
        %497 = vmatpush1.bf16.msra.mxu0 0
        %498 = vmatprep.subr.bf16.mxu0 0
        %499 = vmatpush1.bf16.msra.mxu0 0
        %500 = vmatprep.subr.bf16.mxu0 0
        %501 = vmatpush1.bf16.msra.mxu0 0
        %502 = vmatprep.subr.bf16.mxu0 0
        %503 = vmatpush1.bf16.msra.mxu0 0
        %504 = vmatprep.subr.bf16.mxu0 0
        %505 = vmatpush1.bf16.msra.mxu0 0
        %506 = vmatprep.subr.bf16.mxu0 0
        %507 = vmatpush1.bf16.msra.mxu0 0
        %508 = vmatprep.subr.bf16.mxu0 0
        %509 = vmatpush1.bf16.msra.mxu0 0
        %510 = vmatprep.mubr.bf16.mxu0 0
        %511 = vmatmul.mubr.bf16.gmra.mrb[0].mxu0 %v266
        %v512 = vpop.f32.mrb[0].mxu0
        %v513 = vadd.f32 0.0, %v512
        %v514 = vpop.f32.mrb[0].mxu0
        %v515 = vadd.f32 0.0, %v514
        %v516 = vpop.f32.mrb[0].mxu0
        %v517 = vpop.f32.mrb[0].mxu0
        %518 = vdwg.mxu0
        %519 = vmatprep.subr.bf16.mxu0 %v401
        %520 = vmatpush1.bf16.msra.mxu0 %v400
        %521 = vmatprep.subr.bf16.mxu0 %v406
        %522 = vmatpush1.bf16.msra.mxu0 %v405
        %523 = vmatprep.subr.bf16.mxu0 %v411
        %524 = vmatpush1.bf16.msra.mxu0 %v410
        %525 = vmatprep.subr.bf16.mxu0 %v416
        %526 = vmatpush1.bf16.msra.mxu0 %v415
        %527 = vmatprep.subr.bf16.mxu0 %v421
        %528 = vmatpush1.bf16.msra.mxu0 %v420
        %529 = vmatprep.subr.bf16.mxu0 %v426
        %530 = vmatpush1.bf16.msra.mxu0 %v425
        %531 = vmatprep.subr.bf16.mxu0 %v431
        %532 = vmatpush1.bf16.msra.mxu0 %v430
        %533 = vmatprep.subr.bf16.mxu0 %v436
        %534 = vmatpush1.bf16.msra.mxu0 %v435
        %535 = vmatprep.subr.bf16.mxu0 0
        %536 = vmatpush1.bf16.msra.mxu0 0
        %537 = vmatprep.subr.bf16.mxu0 0
        %538 = vmatpush1.bf16.msra.mxu0 0
        %539 = vmatprep.subr.bf16.mxu0 0
        %540 = vmatpush1.bf16.msra.mxu0 0
        %541 = vmatprep.subr.bf16.mxu0 0
        %542 = vmatpush1.bf16.msra.mxu0 0
        %543 = vmatprep.subr.bf16.mxu0 0
        %544 = vmatpush1.bf16.msra.mxu0 0
        %545 = vmatprep.subr.bf16.mxu0 0
        %546 = vmatpush1.bf16.msra.mxu0 0
        %547 = vmatprep.subr.bf16.mxu0 0
        %548 = vmatpush1.bf16.msra.mxu0 0
        %549 = vmatprep.subr.bf16.mxu0 0
        %550 = vmatpush1.bf16.msra.mxu0 0
        %551 = vmatprep.mubr.bf16.mxu0 0
        %552 = vmatmul.mubr.bf16.gmra.mrb[0].mxu0 %v266
        %v553 = vpop.f32.mrb[0].mxu0
        %v554 = vadd.f32 0.0, %v553
        %v555 = vpop.f32.mrb[0].mxu0
        %v556 = vadd.f32 0.0, %v555
        %v557 = vpop.f32.mrb[0].mxu0
        %v558 = vpop.f32.mrb[0].mxu0
        %559 = vdwg.mxu0
        %560 = vmatprep.subr.bf16.mxu0 0
        %561 = vmatpush1.bf16.msra.mxu0 %v402
        %562 = vmatprep.subr.bf16.mxu0 0
        %563 = vmatpush1.bf16.msra.mxu0 %v407
        %564 = vmatprep.subr.bf16.mxu0 0
        %565 = vmatpush1.bf16.msra.mxu0 %v412
        %566 = vmatprep.subr.bf16.mxu0 0
        %567 = vmatpush1.bf16.msra.mxu0 %v417
        %568 = vmatprep.subr.bf16.mxu0 0
        %569 = vmatpush1.bf16.msra.mxu0 %v422
        %570 = vmatprep.subr.bf16.mxu0 0
        %571 = vmatpush1.bf16.msra.mxu0 %v427
        %572 = vmatprep.subr.bf16.mxu0 0
        %573 = vmatpush1.bf16.msra.mxu0 %v432
        %574 = vmatprep.subr.bf16.mxu0 0
        %575 = vmatpush1.bf16.msra.mxu0 %v437
        %576 = vmatprep.subr.bf16.mxu0 0
        %577 = vmatpush1.bf16.msra.mxu0 0
        %578 = vmatprep.subr.bf16.mxu0 0
        %579 = vmatpush1.bf16.msra.mxu0 0
        %580 = vmatprep.subr.bf16.mxu0 0
        %581 = vmatpush1.bf16.msra.mxu0 0
        %582 = vmatprep.subr.bf16.mxu0 0
        %583 = vmatpush1.bf16.msra.mxu0 0
        %584 = vmatprep.subr.bf16.mxu0 0
        %585 = vmatpush1.bf16.msra.mxu0 0
        %586 = vmatprep.subr.bf16.mxu0 0
        %587 = vmatpush1.bf16.msra.mxu0 0
        %588 = vmatprep.subr.bf16.mxu0 0
        %589 = vmatpush1.bf16.msra.mxu0 0
        %590 = vmatprep.subr.bf16.mxu0 0
        %591 = vmatpush1.bf16.msra.mxu0 0
        %592 = vmatprep.mubr.bf16.mxu0 0
        %593 = vmatmul.mubr.bf16.gmra.mrb[0].mxu0 %v266
        %v594 = vpop.f32.mrb[0].mxu0
        %v595 = vadd.f32 0.0, %v594
        %v596 = vpop.f32.mrb[0].mxu0
        %v597 = vpop.f32.mrb[0].mxu0
        %v598 = vpop.f32.mrb[0].mxu0
        %599 = vdwg.mxu0
        %600 = vmatprep.subr.bf16.mxu0 %v399
        %601 = vmatpush1.bf16.msra.mxu0 %v398
        %602 = vmatprep.subr.bf16.mxu0 %v404
        %603 = vmatpush1.bf16.msra.mxu0 %v403
        %604 = vmatprep.subr.bf16.mxu0 %v409
        %605 = vmatpush1.bf16.msra.mxu0 %v408
        %606 = vmatprep.subr.bf16.mxu0 %v414
        %607 = vmatpush1.bf16.msra.mxu0 %v413
        %608 = vmatprep.subr.bf16.mxu0 %v419
        %609 = vmatpush1.bf16.msra.mxu0 %v418
        %610 = vmatprep.subr.bf16.mxu0 %v424
        %611 = vmatpush1.bf16.msra.mxu0 %v423
        %612 = vmatprep.subr.bf16.mxu0 %v429
        %613 = vmatpush1.bf16.msra.mxu0 %v428
        %614 = vmatprep.subr.bf16.mxu0 %v434
        %615 = vmatpush1.bf16.msra.mxu0 %v433
        %616 = vmatprep.subr.bf16.mxu0 0
        %617 = vmatpush1.bf16.msra.mxu0 0
        %618 = vmatprep.subr.bf16.mxu0 0
        %619 = vmatpush1.bf16.msra.mxu0 0
        %620 = vmatprep.subr.bf16.mxu0 0
        %621 = vmatpush1.bf16.msra.mxu0 0
        %622 = vmatprep.subr.bf16.mxu0 0
        %623 = vmatpush1.bf16.msra.mxu0 0
        %624 = vmatprep.subr.bf16.mxu0 0
        %625 = vmatpush1.bf16.msra.mxu0 0
        %626 = vmatprep.subr.bf16.mxu0 0
        %627 = vmatpush1.bf16.msra.mxu0 0
        %628 = vmatprep.subr.bf16.mxu0 0
        %629 = vmatpush1.bf16.msra.mxu0 0
        %630 = vmatprep.subr.bf16.mxu0 0
        %631 = vmatpush1.bf16.msra.mxu0 0
        %632 = vmatprep.mubr.bf16.mxu0 0
        %633 = vmatmul.mubr.bf16.gmra.mrb[0].mxu0 %v263
        %v634 = vpop.f32.mrb[0].mxu0
        %v635 = vadd.f32 %v513, %v634
        %v636 = vpop.f32.mrb[0].mxu0
        %v637 = vadd.f32 %v515, %v636
        %v638 = vpop.f32.mrb[0].mxu0
        %v639 = vpop.f32.mrb[0].mxu0
        %640 = vdwg.mxu0
        %641 = vmatprep.subr.bf16.mxu0 %v401
        %642 = vmatpush1.bf16.msra.mxu0 %v400
        %643 = vmatprep.subr.bf16.mxu0 %v406
        %644 = vmatpush1.bf16.msra.mxu0 %v405
        %645 = vmatprep.subr.bf16.mxu0 %v411
        %646 = vmatpush1.bf16.msra.mxu0 %v410
        %647 = vmatprep.subr.bf16.mxu0 %v416
        %648 = vmatpush1.bf16.msra.mxu0 %v415
        %649 = vmatprep.subr.bf16.mxu0 %v421
        %650 = vmatpush1.bf16.msra.mxu0 %v420
        %651 = vmatprep.subr.bf16.mxu0 %v426
        %652 = vmatpush1.bf16.msra.mxu0 %v425
        %653 = vmatprep.subr.bf16.mxu0 %v431
        %654 = vmatpush1.bf16.msra.mxu0 %v430
        %655 = vmatprep.subr.bf16.mxu0 %v436
        %656 = vmatpush1.bf16.msra.mxu0 %v435
        %657 = vmatprep.subr.bf16.mxu0 0
        %658 = vmatpush1.bf16.msra.mxu0 0
        %659 = vmatprep.subr.bf16.mxu0 0
        %660 = vmatpush1.bf16.msra.mxu0 0
        %661 = vmatprep.subr.bf16.mxu0 0
        %662 = vmatpush1.bf16.msra.mxu0 0
        %663 = vmatprep.subr.bf16.mxu0 0
        %664 = vmatpush1.bf16.msra.mxu0 0
        %665 = vmatprep.subr.bf16.mxu0 0
        %666 = vmatpush1.bf16.msra.mxu0 0
        %667 = vmatprep.subr.bf16.mxu0 0
        %668 = vmatpush1.bf16.msra.mxu0 0
        %669 = vmatprep.subr.bf16.mxu0 0
        %670 = vmatpush1.bf16.msra.mxu0 0
        %671 = vmatprep.subr.bf16.mxu0 0
        %672 = vmatpush1.bf16.msra.mxu0 0
        %673 = vmatprep.mubr.bf16.mxu0 0
        %674 = vmatmul.mubr.bf16.gmra.mrb[0].mxu0 %v263
        %v675 = vpop.f32.mrb[0].mxu0
        %v676 = vadd.f32 %v554, %v675
        %v677 = vpop.f32.mrb[0].mxu0
        %v678 = vadd.f32 %v556, %v677
        %v679 = vpop.f32.mrb[0].mxu0
        %v680 = vpop.f32.mrb[0].mxu0
        %681 = vdwg.mxu0
        %682 = vmatprep.subr.bf16.mxu0 0
        %683 = vmatpush1.bf16.msra.mxu0 %v402
        %684 = vmatprep.subr.bf16.mxu0 0
        %685 = vmatpush1.bf16.msra.mxu0 %v407
        %686 = vmatprep.subr.bf16.mxu0 0
        %687 = vmatpush1.bf16.msra.mxu0 %v412
        %688 = vmatprep.subr.bf16.mxu0 0
        %689 = vmatpush1.bf16.msra.mxu0 %v417
        %690 = vmatprep.subr.bf16.mxu0 0
        %691 = vmatpush1.bf16.msra.mxu0 %v422
        %692 = vmatprep.subr.bf16.mxu0 0
        %693 = vmatpush1.bf16.msra.mxu0 %v427
        %694 = vmatprep.subr.bf16.mxu0 0
        %695 = vmatpush1.bf16.msra.mxu0 %v432
        %696 = vmatprep.subr.bf16.mxu0 0
        %697 = vmatpush1.bf16.msra.mxu0 %v437
        %698 = vmatprep.subr.bf16.mxu0 0
        %699 = vmatpush1.bf16.msra.mxu0 0
        %700 = vmatprep.subr.bf16.mxu0 0
        %701 = vmatpush1.bf16.msra.mxu0 0
        %702 = vmatprep.subr.bf16.mxu0 0
        %703 = vmatpush1.bf16.msra.mxu0 0
        %704 = vmatprep.subr.bf16.mxu0 0
        %705 = vmatpush1.bf16.msra.mxu0 0
        %706 = vmatprep.subr.bf16.mxu0 0
        %707 = vmatpush1.bf16.msra.mxu0 0
        %708 = vmatprep.subr.bf16.mxu0 0
        %709 = vmatpush1.bf16.msra.mxu0 0
        %710 = vmatprep.subr.bf16.mxu0 0
        %711 = vmatpush1.bf16.msra.mxu0 0
        %712 = vmatprep.subr.bf16.mxu0 0
        %713 = vmatpush1.bf16.msra.mxu0 0
        %714 = vmatprep.mubr.bf16.mxu0 0
        %715 = vmatmul.mubr.bf16.gmra.mrb[0].mxu0 %v263
        %v716 = vpop.f32.mrb[0].mxu0
        %v717 = vadd.f32 %v595, %v716
        %v718 = vpop.f32.mrb[0].mxu0
        %v719 = vpop.f32.mrb[0].mxu0
        %v720 = vpop.f32.mrb[0].mxu0
        %721 = vdwg.mxu0
        %722 = vmatprep.subr.bf16.mxu0 %v399
        %723 = vmatpush1.bf16.msra.mxu0 %v398
        %724 = vmatprep.subr.bf16.mxu0 %v404
        %725 = vmatpush1.bf16.msra.mxu0 %v403
        %726 = vmatprep.subr.bf16.mxu0 %v409
        %727 = vmatpush1.bf16.msra.mxu0 %v408
        %728 = vmatprep.subr.bf16.mxu0 %v414
        %729 = vmatpush1.bf16.msra.mxu0 %v413
        %730 = vmatprep.subr.bf16.mxu0 %v419
        %731 = vmatpush1.bf16.msra.mxu0 %v418
        %732 = vmatprep.subr.bf16.mxu0 %v424
        %733 = vmatpush1.bf16.msra.mxu0 %v423
        %734 = vmatprep.subr.bf16.mxu0 %v429
        %735 = vmatpush1.bf16.msra.mxu0 %v428
        %736 = vmatprep.subr.bf16.mxu0 %v434
        %737 = vmatpush1.bf16.msra.mxu0 %v433
        %738 = vmatprep.subr.bf16.mxu0 0
        %739 = vmatpush1.bf16.msra.mxu0 0
        %740 = vmatprep.subr.bf16.mxu0 0
        %741 = vmatpush1.bf16.msra.mxu0 0
        %742 = vmatprep.subr.bf16.mxu0 0
        %743 = vmatpush1.bf16.msra.mxu0 0
        %744 = vmatprep.subr.bf16.mxu0 0
        %745 = vmatpush1.bf16.msra.mxu0 0
        %746 = vmatprep.subr.bf16.mxu0 0
        %747 = vmatpush1.bf16.msra.mxu0 0
        %748 = vmatprep.subr.bf16.mxu0 0
        %749 = vmatpush1.bf16.msra.mxu0 0
        %750 = vmatprep.subr.bf16.mxu0 0
        %751 = vmatpush1.bf16.msra.mxu0 0
        %752 = vmatprep.subr.bf16.mxu0 0
        %753 = vmatpush1.bf16.msra.mxu0 0
        %754 = vmatprep.mubr.bf16.mxu0 0
        %755 = vmatmul.mubr.bf16.gmra.mrb[0].mxu0 %v269
        %v756 = vpop.f32.mrb[0].mxu0
        %v757 = vadd.f32 0.0, %v756
        %v758 = vpop.f32.mrb[0].mxu0
        %v759 = vadd.f32 0.0, %v758
        %v760 = vpop.f32.mrb[0].mxu0
        %v761 = vpop.f32.mrb[0].mxu0
        %762 = vdwg.mxu0
        %763 = vmatprep.subr.bf16.mxu0 %v401
        %764 = vmatpush1.bf16.msra.mxu0 %v400
        %765 = vmatprep.subr.bf16.mxu0 %v406
        %766 = vmatpush1.bf16.msra.mxu0 %v405
        %767 = vmatprep.subr.bf16.mxu0 %v411
        %768 = vmatpush1.bf16.msra.mxu0 %v410
        %769 = vmatprep.subr.bf16.mxu0 %v416
        %770 = vmatpush1.bf16.msra.mxu0 %v415
        %771 = vmatprep.subr.bf16.mxu0 %v421
        %772 = vmatpush1.bf16.msra.mxu0 %v420
        %773 = vmatprep.subr.bf16.mxu0 %v426
        %774 = vmatpush1.bf16.msra.mxu0 %v425
        %775 = vmatprep.subr.bf16.mxu0 %v431
        %776 = vmatpush1.bf16.msra.mxu0 %v430
        %777 = vmatprep.subr.bf16.mxu0 %v436
        %778 = vmatpush1.bf16.msra.mxu0 %v435
        %779 = vmatprep.subr.bf16.mxu0 0
        %780 = vmatpush1.bf16.msra.mxu0 0
        %781 = vmatprep.subr.bf16.mxu0 0
        %782 = vmatpush1.bf16.msra.mxu0 0
        %783 = vmatprep.subr.bf16.mxu0 0
        %784 = vmatpush1.bf16.msra.mxu0 0
        %785 = vmatprep.subr.bf16.mxu0 0
        %786 = vmatpush1.bf16.msra.mxu0 0
        %787 = vmatprep.subr.bf16.mxu0 0
        %788 = vmatpush1.bf16.msra.mxu0 0
        %789 = vmatprep.subr.bf16.mxu0 0
        %790 = vmatpush1.bf16.msra.mxu0 0
        %791 = vmatprep.subr.bf16.mxu0 0
        %792 = vmatpush1.bf16.msra.mxu0 0
        %793 = vmatprep.subr.bf16.mxu0 0
        %794 = vmatpush1.bf16.msra.mxu0 0
        %795 = vmatprep.mubr.bf16.mxu0 0
        %796 = vmatmul.mubr.bf16.gmra.mrb[0].mxu0 %v269
        %v797 = vpop.f32.mrb[0].mxu0
        %v798 = vadd.f32 0.0, %v797
        %v799 = vpop.f32.mrb[0].mxu0
        %v800 = vadd.f32 0.0, %v799
        %v801 = vpop.f32.mrb[0].mxu0
        %v802 = vpop.f32.mrb[0].mxu0
        %803 = vdwg.mxu0
        %804 = vmatprep.subr.bf16.mxu0 0
        %805 = vmatpush1.bf16.msra.mxu0 %v402
        %806 = vmatprep.subr.bf16.mxu0 0
        %807 = vmatpush1.bf16.msra.mxu0 %v407
        %808 = vmatprep.subr.bf16.mxu0 0
        %809 = vmatpush1.bf16.msra.mxu0 %v412
        %810 = vmatprep.subr.bf16.mxu0 0
        %811 = vmatpush1.bf16.msra.mxu0 %v417
        %812 = vmatprep.subr.bf16.mxu0 0
        %813 = vmatpush1.bf16.msra.mxu0 %v422
        %814 = vmatprep.subr.bf16.mxu0 0
        %815 = vmatpush1.bf16.msra.mxu0 %v427
        %816 = vmatprep.subr.bf16.mxu0 0
        %817 = vmatpush1.bf16.msra.mxu0 %v432
        %818 = vmatprep.subr.bf16.mxu0 0
        %819 = vmatpush1.bf16.msra.mxu0 %v437
        %820 = vmatprep.subr.bf16.mxu0 0
        %821 = vmatpush1.bf16.msra.mxu0 0
        %822 = vmatprep.subr.bf16.mxu0 0
        %823 = vmatpush1.bf16.msra.mxu0 0
        %824 = vmatprep.subr.bf16.mxu0 0
        %825 = vmatpush1.bf16.msra.mxu0 0
        %826 = vmatprep.subr.bf16.mxu0 0
        %827 = vmatpush1.bf16.msra.mxu0 0
        %828 = vmatprep.subr.bf16.mxu0 0
        %829 = vmatpush1.bf16.msra.mxu0 0
        %830 = vmatprep.subr.bf16.mxu0 0
        %831 = vmatpush1.bf16.msra.mxu0 0
        %832 = vmatprep.subr.bf16.mxu0 0
        %833 = vmatpush1.bf16.msra.mxu0 0
        %834 = vmatprep.subr.bf16.mxu0 0
        %835 = vmatpush1.bf16.msra.mxu0 0
        %836 = vmatprep.mubr.bf16.mxu0 0
        %837 = vmatmul.mubr.bf16.gmra.mrb[0].mxu0 %v269
        %v838 = vpop.f32.mrb[0].mxu0
        %v839 = vadd.f32 0.0, %v838
        %v840 = vpop.f32.mrb[0].mxu0
        %v841 = vpop.f32.mrb[0].mxu0
        %v842 = vpop.f32.mrb[0].mxu0
        %843 = vdwg.mxu0
        %v844 = vadd.f32 %v635, %v757
        %v845 = vadd.f32 %v637, %v759
        %v846 = vadd.f32 %v676, %v798
        %v847 = vadd.f32 %v678, %v800
        %v848 = vadd.f32 %v717, %v839
        %v849 = vld [vmem:[#allocation7] sm:$0xff]
        %v850 = vld [vmem:[#allocation7 + $0x8] sm:$0x3]
        %v853 = vlaneseq
        %v854 = vshrl.u32 %v853, 7
        %v855 = vsub.s32 0, %v854
        %v856 = vrot.slane %v849, %v855
        %v857 = vlaneseq
        %v858 = vshrl.u32 %v857, 7
        %v859 = vsub.s32 2, %v858
        %v860 = vrot.slane %v849, %v859
        %v861 = vlaneseq
        %v862 = vshrl.u32 %v861, 7
        %v863 = vsub.s32 4, %v862
        %v864 = vrot.slane %v849, %v863
        %v865 = vlaneseq
        %v866 = vshrl.u32 %v865, 7
        %v867 = vsub.s32 6, %v866
        %v868 = vrot.slane %v849, %v867
        %v869 = vlaneseq
        %v870 = vshrl.u32 %v869, 7
        %v871 = vsub.s32 0, %v870
        %v872 = vrot.slane %v850, %v871
        %v878 = vlaneseq
        %v879 = vshrl.u32 %v878, 7
        %v880 = vsub.s32 0, %v879
        %v881 = vrot.slane %v856, %v880
        %v882 = vlaneseq
        %v883 = vshrl.u32 %v882, 7
        %v884 = vsub.s32 0, %v883
        %v885 = vrot.slane %v860, %v884
        %v886 = vlaneseq
        %v887 = vshrl.u32 %v886, 7
        %v888 = vsub.s32 0, %v887
        %v889 = vrot.slane %v864, %v888
        %v890 = vlaneseq
        %v891 = vshrl.u32 %v890, 7
        %v892 = vsub.s32 0, %v891
        %v893 = vrot.slane %v868, %v892
        %v894 = vlaneseq
        %v895 = vshrl.u32 %v894, 7
        %v896 = vsub.s32 0, %v895
        %v897 = vrot.slane %v872, %v896
        %v898 = vsub.f32 %v844, %v881
        %v899 = vsub.f32 %v845, %v885
        %v900 = vsub.f32 %v846, %v889
        %v901 = vsub.f32 %v847, %v893
        %v902 = vsub.f32 %v848, %v897
        %v903 = vlaneseq
        %v904 = vshrl.u32 %v903, 7
        %v905 = vsub.s32 1, %v904
        %v906 = vrot.slane %v849, %v905
        %v907 = vlaneseq
        %v908 = vshrl.u32 %v907, 7
        %v909 = vsub.s32 3, %v908
        %v910 = vrot.slane %v849, %v909
        %v911 = vlaneseq
        %v912 = vshrl.u32 %v911, 7
        %v913 = vsub.s32 5, %v912
        %v914 = vrot.slane %v849, %v913
        %v915 = vlaneseq
        %v916 = vshrl.u32 %v915, 7
        %v917 = vsub.s32 7, %v916
        %v918 = vrot.slane %v849, %v917
        %v919 = vlaneseq
        %v920 = vshrl.u32 %v919, 7
        %v921 = vsub.s32 1, %v920
        %v922 = vrot.slane %v850, %v921
        %v928 = vlaneseq
        %v929 = vshrl.u32 %v928, 7
        %v930 = vsub.s32 1, %v929
        %v931 = vrot.slane %v906, %v930
        %v932 = vlaneseq
        %v933 = vshrl.u32 %v932, 7
        %v934 = vsub.s32 1, %v933
        %v935 = vrot.slane %v910, %v934
        %v936 = vlaneseq
        %v937 = vshrl.u32 %v936, 7
        %v938 = vsub.s32 1, %v937
        %v939 = vrot.slane %v914, %v938
        %v940 = vlaneseq
        %v941 = vshrl.u32 %v940, 7
        %v942 = vsub.s32 1, %v941
        %v943 = vrot.slane %v918, %v942
        %v944 = vlaneseq
        %v945 = vshrl.u32 %v944, 7
        %v946 = vsub.s32 1, %v945
        %v947 = vrot.slane %v922, %v946
        %v948 = vmul.f32 %v898, %v931
        %v949 = vmul.f32 %v899, %v935
        %v950 = vmul.f32 %v900, %v939
        %v951 = vmul.f32 %v901, %v943
        %v952 = vmul.f32 %v902, %v947
        %v953 = vmul.f32 %v948, %v948
        %v954 = vmul.f32 %v949, %v949
        %v955 = vmul.f32 %v950, %v950
        %v956 = vmul.f32 %v951, %v951
        %v957 = vmul.f32 %v952, %v952
        %v958 = vsub.f32 0.0, %v953
        %v959 = vsub.f32 0.0, %v954
        %v960 = vsub.f32 0.0, %v955
        %v961 = vsub.f32 0.0, %v956
        %v962 = vsub.f32 0.0, %v957
        %v963 = vmul.f32 %v958, 1.442695
        %v964 = vpow.pop %v963
        %v965 = vmul.f32 %v959, 1.442695
        %v966 = vpow.pop %v965
        %v967 = vmul.f32 %v960, 1.442695
        %v968 = vpow.pop %v967
        %v969 = vmul.f32 %v961, 1.442695
        %v970 = vpow.pop %v969
        %v971 = vmul.f32 %v962, 1.442695
        %v972 = vpow.pop %v971
        %973 = vst [vmem:[%s212] sm:$0xff] %v964
        %974 = vst [vmem:[%s212 + $0x8] sm:$0xff] %v966
        %975 = vst [vmem:[%s212 + $0x10] sm:$0xff] %v968
        %976 = vst [vmem:[%s212 + $0x18] sm:$0xff] %v970
        %977 = vst [vmem:[%s212 + $0x20] sm:$0xff] %v972
        %s978 = sand.u32 %s97, 1
        %s979 = scalar_lea.sflag [#allocation4], %s978
        %s980 = sand.u32 %s97, 1
        %s981 = smul.addr %s980, 40
        %s982 = scalar_lea.vmem [#allocation8], %s981
        // Predicated region
        $region45: #{tpu_custom_call.1} parent=31 // pred_check
          %p983 = pneg %p107
        $region46: #{tpu_custom_call.1} parent=31 // pred_check_branch
          %985 = sbr.rel (%p983) target = $region48
        $region47: #{tpu_custom_call.1} parent=31 // pred_region
          %s987 = ssub.s32 640, 640
          %988 = vsyncadd %s979, %s987
          %s989 = smul.addr %s21, 5
          %s990 = smul.addr %s989, 128
          %s991 = scalar_lea.hbm %s3, %s990
          %s993 = sshll.u32 %s982, 4
          %s994 = int_to_ptr.vmem [resolvable:$true] %s993
          %996 = dma.vmem_to_hbm [thread:$0]  %s994, 640, %s991, %s979
        $region48: #{tpu_custom_call.1} parent=31 // pred_fallthru
          _
      $region32: #{tpu_custom_call.1} parent=5 // pred_fallthru
        _
      %p997 = scmp.le.s32.totalorder 2, %s16
      // Predicated region
      $region49: #{tpu_custom_call.1} parent=5 // pred_check
        %p998 = pneg %p997
      $region50: #{tpu_custom_call.1} parent=5 // pred_check_branch
        %1000 = sbr.rel (%p998) target = $region52
      $region51: #{tpu_custom_call.1} parent=5 // pred_region
        %s1001 = ssub.s32 %s16, 2
        // Predicated region
        $region53: #{tpu_custom_call.1} parent=51 // pred_check
          %p1002 = pneg %p113
        $region54: #{tpu_custom_call.1} parent=51 // pred_check_branch
          %1004 = sbr.rel (%p1002) target = $region56
        $region55: #{tpu_custom_call.1} parent=51 // pred_region
          %s1005 = sand.u32 %s98, 1
          %s1006 = scalar_lea.sflag [#allocation4], %s1005
          %s1007 = sand.u32 %s98, 1
          %s1008 = smul.addr %s1007, 40
          %s1009 = scalar_lea.vmem [#allocation8], %s1008
          %1010 = dma.done %s1006, 640
        $region56: #{tpu_custom_call.1} parent=51 // pred_fallthru
          _
      $region52: #{tpu_custom_call.1} parent=5 // pred_fallthru
        _
    $region6: #{tpu_custom_call.1} parent=1 // loop_footer
      %s20 = sadd.s32 1, %s16
    $region7: #{tpu_custom_call.1} parent=1 // loop_footer_branch
      %15 = sbr.rel target = $region3
    $region8: #{tpu_custom_call.1} parent=1 // loop_exit
      _
    %1011 = vsyncpa [#allocation3], 1
    %s1012 = scalar_lea.sflag [#allocation3], 1
    %1013 = vsyncpa %s1012, 1
    %1014 = vsyncpa [#allocation6], 1
    %1015 = vsyncpa [#allocation4], 1
    %s1016 = scalar_lea.sflag [#allocation4], 1
    %1017 = vsyncpa %s1016, 1

</llo_original>
